<compile_context>
chip_gen: v7x
topology: tpu7x:2x2x1
jax: 0.10.0
libtpu: 0.0.40
codegen_flags: <defaults>
</compile_context>

<pallas_src>
import functools

import jax
import jax.numpy as jnp
from jax import lax
from jax.experimental import pallas as pl
from jax.experimental.pallas import tpu as pltpu


def _round_up(x: int, m: int) -> int:
    return ((x + m - 1) // m) * m


def make_rnn_kernel(alpha: float, time_block: int):
    one_minus_alpha = 1.0 - alpha

    def kernel(u_ref, h0_ref, wrec_ref, hs_ref, h_scr):
        g = pl.program_id(0)

        # Initialize the carried hidden state on the first grid step.
        @pl.when(g == 0)
        def _():
            h_scr[...] = h0_ref[...]

        w_rec = wrec_ref[...]          # (H_pad, H_pad), resident in VMEM

        def step(s, h):
            # Serial critical path: one MXU matmul + tanh (EUP) per step.
            z = jnp.dot(jnp.tanh(h), w_rec,
                        preferred_element_type=jnp.float32) + u_ref[s]
            h_new = one_minus_alpha * h + alpha * z
            hs_ref[s] = h_new
            return h_new

        h_final = lax.fori_loop(0, time_block, step, h_scr[...], unroll=True)
        h_scr[...] = h_final           # carry to the next time block

    return kernel


@functools.partial(jax.jit, static_argnames=("alpha", "reg_ratio", "time_block"))
def leaky_current_rnn_forward(x, h0, W_rec, W_in, W_out, b_rec, b_in,
                              *, alpha=0.5, reg_ratio=0.5, time_block=8):
    """x: (B, T, I), h0: (B, H). Returns (outputs (B,T,O), hidden (T+1,B,H), tcr_reg)."""
    B, T, I = x.shape
    H = h0.shape[1]
    n_reg = int(round(H * reg_ratio))

    # --- pad to hardware tiles ------------------------------------------------
    B_pad = _round_up(B, 8)           # sublane
    H_pad = _round_up(H, 128)         # lane
    TB = int(time_block)
    T_pad = _round_up(T, TB)

    f32 = jnp.float32

    # Input current for every timestep: one big lane-dense matmul (hoisted out of
    # the serial recurrence).  u(t) = x(t) @ W_in + b_in + b_rec.
    u = jnp.einsum('bti,ih->tbh', x.astype(f32), W_in.astype(f32))     # (T, B, H)
    u = u + (b_in + b_rec).astype(f32)[None, None, :]
    u_pad = jnp.pad(u, ((0, T_pad - T), (0, B_pad - B), (0, H_pad - H)))

    h0_pad = jnp.pad(h0.astype(f32), ((0, B_pad - B), (0, H_pad - H)))
    W_rec_p = jnp.pad(W_rec.astype(f32), ((0, H_pad - H), (0, H_pad - H)))

    kernel = make_rnn_kernel(float(alpha), TB)

    hidden_pad = pl.pallas_call(
        kernel,
        out_shape=jax.ShapeDtypeStruct((T_pad, B_pad, H_pad), f32),
        grid_spec=pltpu.PrefetchScalarGridSpec(
            num_scalar_prefetch=0,
            grid=(T_pad // TB,),
            in_specs=[
                pl.BlockSpec((TB, B_pad, H_pad), lambda g: (g, 0, 0)),   # u block
                pl.BlockSpec((B_pad, H_pad), lambda g: (0, 0)),          # h0
                pl.BlockSpec((H_pad, H_pad), lambda g: (0, 0)),          # W_rec
            ],
            out_specs=pl.BlockSpec((TB, B_pad, H_pad), lambda g: (g, 0, 0)),
            scratch_shapes=[
                pltpu.VMEM((B_pad, H_pad), f32),                         # carried h
            ],
        ),
        compiler_params=pltpu.CompilerParams(
            dimension_semantics=("arbitrary",)),
    )(u_pad, h0_pad, W_rec_p)

    hidden_tm = hidden_pad[:T, :B, :H]                                  # (T, B, H)
    hidden_states = jnp.concatenate([h0[None].astype(f32), hidden_tm],
                                    axis=0)                             # (T+1, B, H)

    # Readout: single lane-dense XLA matmul over all timesteps.
    outputs = jnp.einsum('tbh,ho->bto', hidden_tm, W_out.astype(f32))   # (B, T, O)

    # Temporal-consistency regularizer, derived entirely from hidden states:
    #   term1: sum_t (h(t) - h(t-1))^2 on first n_reg units
    #   term2: sum_{t>=1} (z(t) - z(t-1))^2 with z(t) = (h(t) - (1-a) h(t-1)) / a
    hs = hidden_states
    d1 = hs[1:, :, :n_reg] - hs[:-1, :, :n_reg]
    reg = jnp.sum(d1 * d1)
    z = (hs[1:] - (1.0 - alpha) * hs[:-1]) * (1.0 / alpha)
    d2 = z[1:, :, :n_reg] - z[:-1, :, :n_reg]
    reg = reg + jnp.sum(d2 * d2)
    tcr_reg = reg / T / B / n_reg

    return outputs, hidden_states, tcr_reg


def reference_forward(x, h0, W_rec, W_in, W_out, b_rec, b_in,
                      alpha=0.5, reg_ratio=0.5):
    """Pure-JAX reference mirroring leaky_current_RNN.forward_full (add_noise=False)."""
    B, T, I = x.shape
    H = h0.shape[1]
    n_reg = int(round(H * reg_ratio))
    h = h0
    z = jnp.zeros_like(h)
    hidden = [h]
    outs = []
    reg = 0.0
    for t in range(T):
        h_from_prev = (1.0 - alpha) * h
        h_rec = jnp.tanh(h) @ W_rec + b_rec
        h_in = x[:, t] @ W_in + b_in
        z_old = z
        h = h_from_prev + alpha * (h_rec + h_in)
        z = h_rec + h_in
        hidden.append(h)
        reg = reg + jnp.sum((h[:, :n_reg] - h_from_prev[:, :n_reg] / (1.0 - alpha)) ** 2)
        if t > 0:
            reg = reg + jnp.sum((z[:, :n_reg] - z_old[:, :n_reg]) ** 2)
        outs.append(h @ W_out)
    outputs = jnp.stack(outs, axis=1)          # (B, T, O)
    hidden_states = jnp.stack(hidden, axis=0)  # (T+1, B, H)
    tcr_reg = reg / T / B / n_reg
    return outputs, hidden_states, tcr_reg


def xavier_uniform(key, shape):
    fan_in, fan_out = shape
    bound = (6.0 / (fan_in + fan_out)) ** 0.5
    return jax.random.uniform(key, shape, jnp.float32, -bound, bound)


if __name__ == "__main__":
    # Small shapes consistent with the module: (batch, seq, input) / hidden / output.
    B, T, I, H, O = 2, 8, 4, 32, 8
    ALPHA, REG_RATIO, BIAS = 0.5, 0.5, 0.0

    key = jax.random.PRNGKey(0)
    k_x, k_h, k_rec, k_in, k_out = jax.random.split(key, 5)

    # Deterministic parameter init (K == hidden_dims branch: full-rank W_rec).
    W_rec = xavier_uniform(k_rec, (H, H))
    W_in = xavier_uniform(k_in, (I, H))
    W_out = xavier_uniform(k_out, (H, O))
    b_rec = jnp.full((H,), BIAS, jnp.float32)
    b_in = jnp.full((H,), BIAS, jnp.float32)

    x = jax.random.normal(k_x, (B, T, I), jnp.float32)
    h0 = jax.random.normal(k_h, (B, H), jnp.float32)

    outputs, hidden_states, tcr_reg = leaky_current_rnn_forward(
        x, h0, W_rec, W_in, W_out, b_rec, b_in,
        alpha=ALPHA, reg_ratio=REG_RATIO, time_block=8)
    jax.block_until_ready((outputs, hidden_states, tcr_reg))

    ref_out, ref_hidden, ref_reg = reference_forward(
        x, h0, W_rec, W_in, W_out, b_rec, b_in, alpha=ALPHA, reg_ratio=REG_RATIO)

    # Tolerance 1e-4: precomputed input current and the wrapper-derived z reorder
    # f32 accumulations relative to the step-by-step reference.
    assert jnp.allclose(outputs, ref_out, atol=1e-4, rtol=1e-4)
    assert jnp.allclose(hidden_states, ref_hidden, atol=1e-4, rtol=1e-4)
    assert jnp.allclose(tcr_reg, ref_reg, atol=1e-4, rtol=1e-4)

    print("KERNEL_OK")
</pallas_src>

<mosaic_0001>
module attributes {stable_mosaic.version = 11 : i64} {
  func.func @kernel(%arg0: i32, %arg1: memref<8x8x128xf32, #tpu.memory_space<vmem>>, %arg2: memref<8x128xf32, #tpu.memory_space<vmem>>, %arg3: memref<128x128xf32, #tpu.memory_space<vmem>>, %arg4: memref<8x8x128xf32, #tpu.memory_space<vmem>>, %arg5: memref<8x128xf32, #tpu.memory_space<vmem>>) attributes {dimension_semantics = [#tpu.dimension_semantics<arbitrary>], iteration_bounds = array<i64: 1>, scalar_prefetch = 0 : i64, scratch_operands = 1 : i64, tpu.core_type = #tpu.core_type<tc>, window_params = [{transform_indices = @transform_0, window_bounds = array<i64: 8, 8, 128>}, {pipeline_mode = #tpu.pipeline_mode<synchronous>, transform_indices = @transform_1, window_bounds = array<i64: 8, 128>}, {pipeline_mode = #tpu.pipeline_mode<synchronous>, transform_indices = @transform_2, window_bounds = array<i64: 128, 128>}, {transform_indices = @transform_3, window_bounds = array<i64: 8, 8, 128>}]} {
    %c0_i32 = arith.constant 0 : i32
    %0 = arith.cmpi eq, %arg0, %c0_i32 : i32
    %1 = arith.extui %0 : i1 to i32
    %c0_i32_0 = arith.constant 0 : i32
    %2 = arith.cmpi ne, %1, %c0_i32_0 : i32
    scf.if %2 {
      %c0_62 = arith.constant 0 : index
      %c0_63 = arith.constant 0 : index
      %126 = vector.load %arg2[%c0_62, %c0_63] : memref<8x128xf32, #tpu.memory_space<vmem>>, vector<8x128xf32>
      %c0_64 = arith.constant 0 : index
      %c0_65 = arith.constant 0 : index
      %127 = vector.load %arg5[%c0_64, %c0_65] : memref<8x128xf32, #tpu.memory_space<vmem>>, vector<8x128xf32>
      tpu.vector_store %arg5[%c0_64, %c0_65], %126 {strides = array<i32>} : memref<8x128xf32, #tpu.memory_space<vmem>>, vector<8x128xf32>,
    } else {
    }
    %c0 = arith.constant 0 : index
    %c0_1 = arith.constant 0 : index
    %3 = vector.load %arg3[%c0, %c0_1] : memref<128x128xf32, #tpu.memory_space<vmem>>, vector<128x128xf32>
    %c0_2 = arith.constant 0 : index
    %c0_3 = arith.constant 0 : index
    %4 = vector.load %arg5[%c0_2, %c0_3] : memref<8x128xf32, #tpu.memory_space<vmem>>, vector<8x128xf32>
    %c0_i32_4 = arith.constant 0 : i32
    %5 = math.tanh %4 : vector<8x128xf32>
    %cst = arith.constant dense<0.000000e+00> : vector<8x128xf32>
    %6 = tpu.matmul %5, %3, %cst {dimension_numbers = #tpu.dot_dimension_numbers<[1], [0], [0], [1], [0, 0, 1, 1], [], []>} : vector<8x128xf32>, vector<128x128xf32>, vector<8x128xf32> -> vector<8x128xf32>
    %7 = arith.index_cast %c0_i32_4 : i32 to index
    %c0_5 = arith.constant 0 : index
    %c0_6 = arith.constant 0 : index
    %8 = vector.load %arg1[%7, %c0_5, %c0_6] : memref<8x8x128xf32, #tpu.memory_space<vmem>>, vector<1x8x128xf32>
    %9 = vector.shape_cast %8 : vector<1x8x128xf32> to vector<8x128xf32>
    %10 = arith.addf %6, %9 : vector<8x128xf32>
    %cst_7 = arith.constant 5.000000e-01 : f32
    %11 = vector.broadcast %cst_7 : f32 to vector<8x128xf32>
    %12 = arith.mulf %11, %4 : vector<8x128xf32>
    %cst_8 = arith.constant 5.000000e-01 : f32
    %13 = vector.broadcast %cst_8 : f32 to vector<8x128xf32>
    %14 = arith.mulf %13, %10 : vector<8x128xf32>
    %15 = arith.addf %12, %14 : vector<8x128xf32>
    %16 = arith.index_cast %c0_i32_4 : i32 to index
    %c0_9 = arith.constant 0 : index
    %c0_10 = arith.constant 0 : index
    %17 = vector.load %arg4[%16, %c0_9, %c0_10] : memref<8x8x128xf32, #tpu.memory_space<vmem>>, vector<1x8x128xf32>
    %18 = vector.shape_cast %17 : vector<1x8x128xf32> to vector<8x128xf32>
    %19 = vector.shape_cast %15 : vector<8x128xf32> to vector<1x8x128xf32>
    tpu.vector_store %arg4[%16, %c0_9, %c0_10], %19 {strides = array<i32>} : memref<8x8x128xf32, #tpu.memory_space<vmem>>, vector<1x8x128xf32>,
    %c1_i32 = arith.constant 1 : i32
    %20 = math.tanh %15 : vector<8x128xf32>
    %cst_11 = arith.constant dense<0.000000e+00> : vector<8x128xf32>
    %21 = tpu.matmul %20, %3, %cst_11 {dimension_numbers = #tpu.dot_dimension_numbers<[1], [0], [0], [1], [0, 0, 1, 1], [], []>} : vector<8x128xf32>, vector<128x128xf32>, vector<8x128xf32> -> vector<8x128xf32>
    %22 = arith.index_cast %c1_i32 : i32 to index
    %c0_12 = arith.constant 0 : index
    %c0_13 = arith.constant 0 : index
    %23 = vector.load %arg1[%22, %c0_12, %c0_13] : memref<8x8x128xf32, #tpu.memory_space<vmem>>, vector<1x8x128xf32>
    %24 = vector.shape_cast %23 : vector<1x8x128xf32> to vector<8x128xf32>
    %25 = arith.addf %21, %24 : vector<8x128xf32>
    %cst_14 = arith.constant 5.000000e-01 : f32
    %26 = vector.broadcast %cst_14 : f32 to vector<8x128xf32>
    %27 = arith.mulf %26, %15 : vector<8x128xf32>
    %cst_15 = arith.constant 5.000000e-01 : f32
    %28 = vector.broadcast %cst_15 : f32 to vector<8x128xf32>
    %29 = arith.mulf %28, %25 : vector<8x128xf32>
    %30 = arith.addf %27, %29 : vector<8x128xf32>
    %31 = arith.index_cast %c1_i32 : i32 to index
    %c0_16 = arith.constant 0 : index
    %c0_17 = arith.constant 0 : index
    %32 = vector.load %arg4[%31, %c0_16, %c0_17] : memref<8x8x128xf32, #tpu.memory_space<vmem>>, vector<1x8x128xf32>
    %33 = vector.shape_cast %32 : vector<1x8x128xf32> to vector<8x128xf32>
    %34 = vector.shape_cast %30 : vector<8x128xf32> to vector<1x8x128xf32>
    tpu.vector_store %arg4[%31, %c0_16, %c0_17], %34 {strides = array<i32>} : memref<8x8x128xf32, #tpu.memory_space<vmem>>, vector<1x8x128xf32>,
    %c2_i32 = arith.constant 2 : i32
    %35 = math.tanh %30 : vector<8x128xf32>
    %cst_18 = arith.constant dense<0.000000e+00> : vector<8x128xf32>
    %36 = tpu.matmul %35, %3, %cst_18 {dimension_numbers = #tpu.dot_dimension_numbers<[1], [0], [0], [1], [0, 0, 1, 1], [], []>} : vector<8x128xf32>, vector<128x128xf32>, vector<8x128xf32> -> vector<8x128xf32>
    %37 = arith.index_cast %c2_i32 : i32 to index
    %c0_19 = arith.constant 0 : index
    %c0_20 = arith.constant 0 : index
    %38 = vector.load %arg1[%37, %c0_19, %c0_20] : memref<8x8x128xf32, #tpu.memory_space<vmem>>, vector<1x8x128xf32>
    %39 = vector.shape_cast %38 : vector<1x8x128xf32> to vector<8x128xf32>
    %40 = arith.addf %36, %39 : vector<8x128xf32>
    %cst_21 = arith.constant 5.000000e-01 : f32
    %41 = vector.broadcast %cst_21 : f32 to vector<8x128xf32>
    %42 = arith.mulf %41, %30 : vector<8x128xf32>
    %cst_22 = arith.constant 5.000000e-01 : f32
    %43 = vector.broadcast %cst_22 : f32 to vector<8x128xf32>
    %44 = arith.mulf %43, %40 : vector<8x128xf32>
    %45 = arith.addf %42, %44 : vector<8x128xf32>
    %46 = arith.index_cast %c2_i32 : i32 to index
    %c0_23 = arith.constant 0 : index
    %c0_24 = arith.constant 0 : index
    %47 = vector.load %arg4[%46, %c0_23, %c0_24] : memref<8x8x128xf32, #tpu.memory_space<vmem>>, vector<1x8x128xf32>
    %48 = vector.shape_cast %47 : vector<1x8x128xf32> to vector<8x128xf32>
    %49 = vector.shape_cast %45 : vector<8x128xf32> to vector<1x8x128xf32>
    tpu.vector_store %arg4[%46, %c0_23, %c0_24], %49 {strides = array<i32>} : memref<8x8x128xf32, #tpu.memory_space<vmem>>, vector<1x8x128xf32>,
    %c3_i32 = arith.constant 3 : i32
    %50 = math.tanh %45 : vector<8x128xf32>
    %cst_25 = arith.constant dense<0.000000e+00> : vector<8x128xf32>
    %51 = tpu.matmul %50, %3, %cst_25 {dimension_numbers = #tpu.dot_dimension_numbers<[1], [0], [0], [1], [0, 0, 1, 1], [], []>} : vector<8x128xf32>, vector<128x128xf32>, vector<8x128xf32> -> vector<8x128xf32>
    %52 = arith.index_cast %c3_i32 : i32 to index
    %c0_26 = arith.constant 0 : index
    %c0_27 = arith.constant 0 : index
    %53 = vector.load %arg1[%52, %c0_26, %c0_27] : memref<8x8x128xf32, #tpu.memory_space<vmem>>, vector<1x8x128xf32>
    %54 = vector.shape_cast %53 : vector<1x8x128xf32> to vector<8x128xf32>
    %55 = arith.addf %51, %54 : vector<8x128xf32>
    %cst_28 = arith.constant 5.000000e-01 : f32
    %56 = vector.broadcast %cst_28 : f32 to vector<8x128xf32>
    %57 = arith.mulf %56, %45 : vector<8x128xf32>
    %cst_29 = arith.constant 5.000000e-01 : f32
    %58 = vector.broadcast %cst_29 : f32 to vector<8x128xf32>
    %59 = arith.mulf %58, %55 : vector<8x128xf32>
    %60 = arith.addf %57, %59 : vector<8x128xf32>
    %61 = arith.index_cast %c3_i32 : i32 to index
    %c0_30 = arith.constant 0 : index
    %c0_31 = arith.constant 0 : index
    %62 = vector.load %arg4[%61, %c0_30, %c0_31] : memref<8x8x128xf32, #tpu.memory_space<vmem>>, vector<1x8x128xf32>
    %63 = vector.shape_cast %62 : vector<1x8x128xf32> to vector<8x128xf32>
    %64 = vector.shape_cast %60 : vector<8x128xf32> to vector<1x8x128xf32>
    tpu.vector_store %arg4[%61, %c0_30, %c0_31], %64 {strides = array<i32>} : memref<8x8x128xf32, #tpu.memory_space<vmem>>, vector<1x8x128xf32>,
    %c4_i32 = arith.constant 4 : i32
    %65 = math.tanh %60 : vector<8x128xf32>
    %cst_32 = arith.constant dense<0.000000e+00> : vector<8x128xf32>
    %66 = tpu.matmul %65, %3, %cst_32 {dimension_numbers = #tpu.dot_dimension_numbers<[1], [0], [0], [1], [0, 0, 1, 1], [], []>} : vector<8x128xf32>, vector<128x128xf32>, vector<8x128xf32> -> vector<8x128xf32>
    %67 = arith.index_cast %c4_i32 : i32 to index
    %c0_33 = arith.constant 0 : index
    %c0_34 = arith.constant 0 : index
    %68 = vector.load %arg1[%67, %c0_33, %c0_34] : memref<8x8x128xf32, #tpu.memory_space<vmem>>, vector<1x8x128xf32>
    %69 = vector.shape_cast %68 : vector<1x8x128xf32> to vector<8x128xf32>
    %70 = arith.addf %66, %69 : vector<8x128xf32>
    %cst_35 = arith.constant 5.000000e-01 : f32
    %71 = vector.broadcast %cst_35 : f32 to vector<8x128xf32>
    %72 = arith.mulf %71, %60 : vector<8x128xf32>
    %cst_36 = arith.constant 5.000000e-01 : f32
    %73 = vector.broadcast %cst_36 : f32 to vector<8x128xf32>
    %74 = arith.mulf %73, %70 : vector<8x128xf32>
    %75 = arith.addf %72, %74 : vector<8x128xf32>
    %76 = arith.index_cast %c4_i32 : i32 to index
    %c0_37 = arith.constant 0 : index
    %c0_38 = arith.constant 0 : index
    %77 = vector.load %arg4[%76, %c0_37, %c0_38] : memref<8x8x128xf32, #tpu.memory_space<vmem>>, vector<1x8x128xf32>
    %78 = vector.shape_cast %77 : vector<1x8x128xf32> to vector<8x128xf32>
    %79 = vector.shape_cast %75 : vector<8x128xf32> to vector<1x8x128xf32>
    tpu.vector_store %arg4[%76, %c0_37, %c0_38], %79 {strides = array<i32>} : memref<8x8x128xf32, #tpu.memory_space<vmem>>, vector<1x8x128xf32>,
    %c5_i32 = arith.constant 5 : i32
    %80 = math.tanh %75 : vector<8x128xf32>
    %cst_39 = arith.constant dense<0.000000e+00> : vector<8x128xf32>
    %81 = tpu.matmul %80, %3, %cst_39 {dimension_numbers = #tpu.dot_dimension_numbers<[1], [0], [0], [1], [0, 0, 1, 1], [], []>} : vector<8x128xf32>, vector<128x128xf32>, vector<8x128xf32> -> vector<8x128xf32>
    %82 = arith.index_cast %c5_i32 : i32 to index
    %c0_40 = arith.constant 0 : index
    %c0_41 = arith.constant 0 : index
    %83 = vector.load %arg1[%82, %c0_40, %c0_41] : memref<8x8x128xf32, #tpu.memory_space<vmem>>, vector<1x8x128xf32>
    %84 = vector.shape_cast %83 : vector<1x8x128xf32> to vector<8x128xf32>
    %85 = arith.addf %81, %84 : vector<8x128xf32>
    %cst_42 = arith.constant 5.000000e-01 : f32
    %86 = vector.broadcast %cst_42 : f32 to vector<8x128xf32>
    %87 = arith.mulf %86, %75 : vector<8x128xf32>
    %cst_43 = arith.constant 5.000000e-01 : f32
    %88 = vector.broadcast %cst_43 : f32 to vector<8x128xf32>
    %89 = arith.mulf %88, %85 : vector<8x128xf32>
    %90 = arith.addf %87, %89 : vector<8x128xf32>
    %91 = arith.index_cast %c5_i32 : i32 to index
    %c0_44 = arith.constant 0 : index
    %c0_45 = arith.constant 0 : index
    %92 = vector.load %arg4[%91, %c0_44, %c0_45] : memref<8x8x128xf32, #tpu.memory_space<vmem>>, vector<1x8x128xf32>
    %93 = vector.shape_cast %92 : vector<1x8x128xf32> to vector<8x128xf32>
    %94 = vector.shape_cast %90 : vector<8x128xf32> to vector<1x8x128xf32>
    tpu.vector_store %arg4[%91, %c0_44, %c0_45], %94 {strides = array<i32>} : memref<8x8x128xf32, #tpu.memory_space<vmem>>, vector<1x8x128xf32>,
    %c6_i32 = arith.constant 6 : i32
    %95 = math.tanh %90 : vector<8x128xf32>
    %cst_46 = arith.constant dense<0.000000e+00> : vector<8x128xf32>
    %96 = tpu.matmul %95, %3, %cst_46 {dimension_numbers = #tpu.dot_dimension_numbers<[1], [0], [0], [1], [0, 0, 1, 1], [], []>} : vector<8x128xf32>, vector<128x128xf32>, vector<8x128xf32> -> vector<8x128xf32>
    %97 = arith.index_cast %c6_i32 : i32 to index
    %c0_47 = arith.constant 0 : index
    %c0_48 = arith.constant 0 : index
    %98 = vector.load %arg1[%97, %c0_47, %c0_48] : memref<8x8x128xf32, #tpu.memory_space<vmem>>, vector<1x8x128xf32>
    %99 = vector.shape_cast %98 : vector<1x8x128xf32> to vector<8x128xf32>
    %100 = arith.addf %96, %99 : vector<8x128xf32>
    %cst_49 = arith.constant 5.000000e-01 : f32
    %101 = vector.broadcast %cst_49 : f32 to vector<8x128xf32>
    %102 = arith.mulf %101, %90 : vector<8x128xf32>
    %cst_50 = arith.constant 5.000000e-01 : f32
    %103 = vector.broadcast %cst_50 : f32 to vector<8x128xf32>
    %104 = arith.mulf %103, %100 : vector<8x128xf32>
    %105 = arith.addf %102, %104 : vector<8x128xf32>
    %106 = arith.index_cast %c6_i32 : i32 to index
    %c0_51 = arith.constant 0 : index
    %c0_52 = arith.constant 0 : index
    %107 = vector.load %arg4[%106, %c0_51, %c0_52] : memref<8x8x128xf32, #tpu.memory_space<vmem>>, vector<1x8x128xf32>
    %108 = vector.shape_cast %107 : vector<1x8x128xf32> to vector<8x128xf32>
    %109 = vector.shape_cast %105 : vector<8x128xf32> to vector<1x8x128xf32>
    tpu.vector_store %arg4[%106, %c0_51, %c0_52], %109 {strides = array<i32>} : memref<8x8x128xf32, #tpu.memory_space<vmem>>, vector<1x8x128xf32>,
    %c7_i32 = arith.constant 7 : i32
    %110 = math.tanh %105 : vector<8x128xf32>
    %cst_53 = arith.constant dense<0.000000e+00> : vector<8x128xf32>
    %111 = tpu.matmul %110, %3, %cst_53 {dimension_numbers = #tpu.dot_dimension_numbers<[1], [0], [0], [1], [0, 0, 1, 1], [], []>} : vector<8x128xf32>, vector<128x128xf32>, vector<8x128xf32> -> vector<8x128xf32>
    %112 = arith.index_cast %c7_i32 : i32 to index
    %c0_54 = arith.constant 0 : index
    %c0_55 = arith.constant 0 : index
    %113 = vector.load %arg1[%112, %c0_54, %c0_55] : memref<8x8x128xf32, #tpu.memory_space<vmem>>, vector<1x8x128xf32>
    %114 = vector.shape_cast %113 : vector<1x8x128xf32> to vector<8x128xf32>
    %115 = arith.addf %111, %114 : vector<8x128xf32>
    %cst_56 = arith.constant 5.000000e-01 : f32
    %116 = vector.broadcast %cst_56 : f32 to vector<8x128xf32>
    %117 = arith.mulf %116, %105 : vector<8x128xf32>
    %cst_57 = arith.constant 5.000000e-01 : f32
    %118 = vector.broadcast %cst_57 : f32 to vector<8x128xf32>
    %119 = arith.mulf %118, %115 : vector<8x128xf32>
    %120 = arith.addf %117, %119 : vector<8x128xf32>
    %121 = arith.index_cast %c7_i32 : i32 to index
    %c0_58 = arith.constant 0 : index
    %c0_59 = arith.constant 0 : index
    %122 = vector.load %arg4[%121, %c0_58, %c0_59] : memref<8x8x128xf32, #tpu.memory_space<vmem>>, vector<1x8x128xf32>
    %123 = vector.shape_cast %122 : vector<1x8x128xf32> to vector<8x128xf32>
    %124 = vector.shape_cast %120 : vector<8x128xf32> to vector<1x8x128xf32>
    tpu.vector_store %arg4[%121, %c0_58, %c0_59], %124 {strides = array<i32>} : memref<8x8x128xf32, #tpu.memory_space<vmem>>, vector<1x8x128xf32>,
    %c8_i32 = arith.constant 8 : i32
    %c0_60 = arith.constant 0 : index
    %c0_61 = arith.constant 0 : index
    %125 = vector.load %arg5[%c0_60, %c0_61] : memref<8x128xf32, #tpu.memory_space<vmem>>, vector<8x128xf32>
    tpu.vector_store %arg5[%c0_60, %c0_61], %120 {strides = array<i32>} : memref<8x128xf32, #tpu.memory_space<vmem>>, vector<8x128xf32>,
    return
  }
  func.func @transform_0(%arg0: i32) -> (i32, i32, i32) {
    %c0_i32 = arith.constant 0 : i32
    %c0_i32_0 = arith.constant 0 : i32
    %c0_i32_1 = arith.constant 0 : i32
    return %arg0, %c0_i32, %c0_i32_0 : i32, i32, i32
  }
  func.func @transform_1(%arg0: i32) -> (i32, i32) {
    %c0_i32 = arith.constant 0 : i32
    %c0_i32_0 = arith.constant 0 : i32
    %c0_i32_1 = arith.constant 0 : i32
    return %c0_i32, %c0_i32_0 : i32, i32
  }
  func.func @transform_2(%arg0: i32) -> (i32, i32) {
    %c0_i32 = arith.constant 0 : i32
    %c0_i32_0 = arith.constant 0 : i32
    %c0_i32_1 = arith.constant 0 : i32
    return %c0_i32, %c0_i32_0 : i32, i32
  }
  func.func @transform_3(%arg0: i32) -> (i32, i32, i32) {
    %c0_i32 = arith.constant 0 : i32
    %c0_i32_0 = arith.constant 0 : i32
    %c0_i32_1 = arith.constant 0 : i32
    return %arg0, %c0_i32, %c0_i32_0 : i32, i32, i32
  }
}

</mosaic_0001>

<llo_original>
// kernel: leaky_current_rnn_forward.1
$region0: #{leaky_current_rnn_forward.1}
  #allocation0 [shape = 'u32[]', space=smem, size = 0x4, offset = 0x4, fixed_abs, tag = 'smem constant byte address 0x4 - core index']
  #allocation1 [shape = 'u32[144,128]{1,0:T(1,128)}', space=vmem, size = 0x12000, scoped, tag = 'internal scratch']
  #allocation2 [shape = 'f32[8,128]{1,0:T(8,128)}', space=vmem, size = 0x1000, scoped, tag = 'scratch operand']
  %s0 = inlined_call_operand.vmem [shape: f32[8,8,128], index: 0, kind: input, shape index: {}]
  %s1 = inlined_call_operand.vmem [shape: f32[8,128], index: 1, kind: input, shape index: {}]
  %s2 = inlined_call_operand.vmem [shape: f32[128,128], index: 2, kind: input, shape index: {}]
  %s3 = inlined_call_operand.vmem [shape: f32[8,8,128], index: 3, kind: output, shape index: {}]
  %s4 = sld [smem:[#allocation0]]
  $region26: #{leaky_current_rnn_forward.1} parent=0
    _
  %s6 = ssub.s32 1, %s4
  %s7 = scalar_select 0, %s6, %s4
  // Predicated region
  $region2: #{leaky_current_rnn_forward.1} parent=0 // pred_check
    _
  $region3: #{leaky_current_rnn_forward.1} parent=0 // pred_check_branch
    %9 = sbr.rel (0) target = $region5
  $region4: #{leaky_current_rnn_forward.1} parent=0 // pred_region
    _
  $region5: #{leaky_current_rnn_forward.1} parent=0 // pred_fallthru
    _
  // Predicated region
  $region6: #{leaky_current_rnn_forward.1} parent=0 // pred_check
    _
  $region7: #{leaky_current_rnn_forward.1} parent=0 // pred_check_branch
    %11 = sbr.rel (0) target = $region9
  $region8: #{leaky_current_rnn_forward.1} parent=0 // pred_region
    _
  $region9: #{leaky_current_rnn_forward.1} parent=0 // pred_fallthru
    _
  // Predicated region
  $region10: #{leaky_current_rnn_forward.1} parent=0 // pred_check
    _
  $region11: #{leaky_current_rnn_forward.1} parent=0 // pred_check_branch
    %13 = sbr.rel (0) target = $region13
  $region12: #{leaky_current_rnn_forward.1} parent=0 // pred_region
    _
  $region13: #{leaky_current_rnn_forward.1} parent=0 // pred_fallthru
    _
  %p14 = scmp.eq.s32.totalorder 0, 0
  // Predicated region
  $region14: #{leaky_current_rnn_forward.1} parent=0 // pred_check
    %p15 = pneg %p14
  $region15: #{leaky_current_rnn_forward.1} parent=0 // pred_check_branch
    %17 = sbr.rel (%p15) target = $region17
  $region16: #{leaky_current_rnn_forward.1} parent=0 // pred_region
    %v18 = vld [vmem:[%s1] sm:$0xff]
    %19 = vst [vmem:[#allocation2] sm:$0xff] %v18
  $region17: #{leaky_current_rnn_forward.1} parent=0 // pred_fallthru
    _
  %v20 = vld [vmem:[%s2] sm:$0xff]
  %v21 = vld [vmem:[%s2 + $0x8] sm:$0xff]
  %v22 = vld [vmem:[%s2 + $0x10] sm:$0xff]
  %v23 = vld [vmem:[%s2 + $0x18] sm:$0xff]
  %v24 = vld [vmem:[%s2 + $0x20] sm:$0xff]
  %v25 = vld [vmem:[%s2 + $0x28] sm:$0xff]
  %v26 = vld [vmem:[%s2 + $0x30] sm:$0xff]
  %v27 = vld [vmem:[%s2 + $0x38] sm:$0xff]
  %v28 = vld [vmem:[%s2 + $0x40] sm:$0xff]
  %v29 = vld [vmem:[%s2 + $0x48] sm:$0xff]
  %v30 = vld [vmem:[%s2 + $0x50] sm:$0xff]
  %v31 = vld [vmem:[%s2 + $0x58] sm:$0xff]
  %v32 = vld [vmem:[%s2 + $0x60] sm:$0xff]
  %v33 = vld [vmem:[%s2 + $0x68] sm:$0xff]
  %v34 = vld [vmem:[%s2 + $0x70] sm:$0xff]
  %v35 = vld [vmem:[%s2 + $0x78] sm:$0xff]
  %v36 = vld [vmem:[#allocation2] sm:$0xff]
  %v37 = vtanh.pop %v36
  %v38 = vld [vmem:[%s0] sm:$0xff]
  %39 = vmatprep.subr.mxu0 0.0
  %40 = vmatpush1.msra.mxu0 %v20
  %41 = vmatprep.subr.mxu0 0.0
  %42 = vmatpush1.msra.mxu0 %v21
  %43 = vmatprep.subr.mxu0 0.0
  %44 = vmatpush1.msra.mxu0 %v22
  %45 = vmatprep.subr.mxu0 0.0
  %46 = vmatpush1.msra.mxu0 %v23
  %47 = vmatprep.subr.mxu0 0.0
  %48 = vmatpush1.msra.mxu0 %v24
  %49 = vmatprep.subr.mxu0 0.0
  %50 = vmatpush1.msra.mxu0 %v25
  %51 = vmatprep.subr.mxu0 0.0
  %52 = vmatpush1.msra.mxu0 %v26
  %53 = vmatprep.subr.mxu0 0.0
  %54 = vmatpush1.msra.mxu0 %v27
  %55 = vmatprep.subr.mxu0 0.0
  %56 = vmatpush1.msra.mxu0 %v28
  %57 = vmatprep.subr.mxu0 0.0
  %58 = vmatpush1.msra.mxu0 %v29
  %59 = vmatprep.subr.mxu0 0.0
  %60 = vmatpush1.msra.mxu0 %v30
  %61 = vmatprep.subr.mxu0 0.0
  %62 = vmatpush1.msra.mxu0 %v31
  %63 = vmatprep.subr.mxu0 0.0
  %64 = vmatpush1.msra.mxu0 %v32
  %65 = vmatprep.subr.mxu0 0.0
  %66 = vmatpush1.msra.mxu0 %v33
  %67 = vmatprep.subr.mxu0 0.0
  %68 = vmatpush1.msra.mxu0 %v34
  %69 = vmatprep.subr.mxu0 0.0
  %70 = vmatpush1.msra.mxu0 %v35
  %71 = vmatprep.subr.mxu0 0.0
  %72 = vmatpush1.msra.mxu0 0.0
  %73 = vmatprep.subr.mxu0 0.0
  %74 = vmatpush1.msra.mxu0 0.0
  %75 = vmatprep.subr.mxu0 0.0
  %76 = vmatpush1.msra.mxu0 0.0
  %77 = vmatprep.subr.mxu0 0.0
  %78 = vmatpush1.msra.mxu0 0.0
  %79 = vmatprep.subr.mxu0 0.0
  %80 = vmatpush1.msra.mxu0 0.0
  %81 = vmatprep.subr.mxu0 0.0
  %82 = vmatpush1.msra.mxu0 0.0
  %83 = vmatprep.subr.mxu0 0.0
  %84 = vmatpush1.msra.mxu0 0.0
  %85 = vmatprep.subr.mxu0 0.0
  %86 = vmatpush1.msra.mxu0 0.0
  %87 = vmatprep.subr.mxu0 0.0
  %88 = vmatpush1.msra.mxu0 0.0
  %89 = vmatprep.subr.mxu0 0.0
  %90 = vmatpush1.msra.mxu0 0.0
  %91 = vmatprep.subr.mxu0 0.0
  %92 = vmatpush1.msra.mxu0 0.0
  %93 = vmatprep.subr.mxu0 0.0
  %94 = vmatpush1.msra.mxu0 0.0
  %95 = vmatprep.subr.mxu0 0.0
  %96 = vmatpush1.msra.mxu0 0.0
  %97 = vmatprep.subr.mxu0 0.0
  %98 = vmatpush1.msra.mxu0 0.0
  %99 = vmatprep.subr.mxu0 0.0
  %100 = vmatpush1.msra.mxu0 0.0
  %101 = vmatprep.subr.mxu0 0.0
  %102 = vmatpush1.msra.mxu0 0.0
  %103 = vmatprep.mubr.f32.mxu0 0.0
  %104 = vmatmul.mubr.f32.gmra.mrb[0].mxu0 %v37
  %v105 = vpop.f32.mrb[0].mxu0
  %v106 = vadd.f32 %v38, %v105
  %v107 = vpop.f32.mrb[0].mxu0
  %108 = vdwg.mxu0
  %v109 = vmul.f32 %v36, 0.5
  %v110 = vmul.f32 %v106, 0.5
  %v111 = vadd.f32 %v109, %v110
  %112 = vst [vmem:[%s3] sm:$0xff] %v111
  %v113 = vtanh.pop %v111
  %s114 = scalar_lea.vmem %s0, 8
  %v115 = vld [vmem:[%s114] sm:$0xff]
  %116 = vmatprep.subr.mxu0 0.0
  %117 = vmatpush1.msra.mxu0 %v20
  %118 = vmatprep.subr.mxu0 0.0
  %119 = vmatpush1.msra.mxu0 %v21
  %120 = vmatprep.subr.mxu0 0.0
  %121 = vmatpush1.msra.mxu0 %v22
  %122 = vmatprep.subr.mxu0 0.0
  %123 = vmatpush1.msra.mxu0 %v23
  %124 = vmatprep.subr.mxu0 0.0
  %125 = vmatpush1.msra.mxu0 %v24
  %126 = vmatprep.subr.mxu0 0.0
  %127 = vmatpush1.msra.mxu0 %v25
  %128 = vmatprep.subr.mxu0 0.0
  %129 = vmatpush1.msra.mxu0 %v26
  %130 = vmatprep.subr.mxu0 0.0
  %131 = vmatpush1.msra.mxu0 %v27
  %132 = vmatprep.subr.mxu0 0.0
  %133 = vmatpush1.msra.mxu0 %v28
  %134 = vmatprep.subr.mxu0 0.0
  %135 = vmatpush1.msra.mxu0 %v29
  %136 = vmatprep.subr.mxu0 0.0
  %137 = vmatpush1.msra.mxu0 %v30
  %138 = vmatprep.subr.mxu0 0.0
  %139 = vmatpush1.msra.mxu0 %v31
  %140 = vmatprep.subr.mxu0 0.0
  %141 = vmatpush1.msra.mxu0 %v32
  %142 = vmatprep.subr.mxu0 0.0
  %143 = vmatpush1.msra.mxu0 %v33
  %144 = vmatprep.subr.mxu0 0.0
  %145 = vmatpush1.msra.mxu0 %v34
  %146 = vmatprep.subr.mxu0 0.0
  %147 = vmatpush1.msra.mxu0 %v35
  %148 = vmatprep.subr.mxu0 0.0
  %149 = vmatpush1.msra.mxu0 0.0
  %150 = vmatprep.subr.mxu0 0.0
  %151 = vmatpush1.msra.mxu0 0.0
  %152 = vmatprep.subr.mxu0 0.0
  %153 = vmatpush1.msra.mxu0 0.0
  %154 = vmatprep.subr.mxu0 0.0
  %155 = vmatpush1.msra.mxu0 0.0
  %156 = vmatprep.subr.mxu0 0.0
  %157 = vmatpush1.msra.mxu0 0.0
  %158 = vmatprep.subr.mxu0 0.0
  %159 = vmatpush1.msra.mxu0 0.0
  %160 = vmatprep.subr.mxu0 0.0
  %161 = vmatpush1.msra.mxu0 0.0
  %162 = vmatprep.subr.mxu0 0.0
  %163 = vmatpush1.msra.mxu0 0.0
  %164 = vmatprep.subr.mxu0 0.0
  %165 = vmatpush1.msra.mxu0 0.0
  %166 = vmatprep.subr.mxu0 0.0
  %167 = vmatpush1.msra.mxu0 0.0
  %168 = vmatprep.subr.mxu0 0.0
  %169 = vmatpush1.msra.mxu0 0.0
  %170 = vmatprep.subr.mxu0 0.0
  %171 = vmatpush1.msra.mxu0 0.0
  %172 = vmatprep.subr.mxu0 0.0
  %173 = vmatpush1.msra.mxu0 0.0
  %174 = vmatprep.subr.mxu0 0.0
  %175 = vmatpush1.msra.mxu0 0.0
  %176 = vmatprep.subr.mxu0 0.0
  %177 = vmatpush1.msra.mxu0 0.0
  %178 = vmatprep.subr.mxu0 0.0
  %179 = vmatpush1.msra.mxu0 0.0
  %180 = vmatprep.mubr.f32.mxu0 0.0
  %181 = vmatmul.mubr.f32.gmra.mrb[0].mxu0 %v113
  %v182 = vpop.f32.mrb[0].mxu0
  %v183 = vadd.f32 %v115, %v182
  %v184 = vpop.f32.mrb[0].mxu0
  %185 = vdwg.mxu0
  %v186 = vmul.f32 %v111, 0.5
  %v187 = vmul.f32 %v183, 0.5
  %v188 = vadd.f32 %v186, %v187
  %s189 = scalar_lea.vmem %s3, 8
  %190 = vst [vmem:[%s189] sm:$0xff] %v188
  %v191 = vtanh.pop %v188
  %s192 = scalar_lea.vmem %s0, 16
  %v193 = vld [vmem:[%s192] sm:$0xff]
  %194 = vmatprep.subr.mxu0 0.0
  %195 = vmatpush1.msra.mxu0 %v20
  %196 = vmatprep.subr.mxu0 0.0
  %197 = vmatpush1.msra.mxu0 %v21
  %198 = vmatprep.subr.mxu0 0.0
  %199 = vmatpush1.msra.mxu0 %v22
  %200 = vmatprep.subr.mxu0 0.0
  %201 = vmatpush1.msra.mxu0 %v23
  %202 = vmatprep.subr.mxu0 0.0
  %203 = vmatpush1.msra.mxu0 %v24
  %204 = vmatprep.subr.mxu0 0.0
  %205 = vmatpush1.msra.mxu0 %v25
  %206 = vmatprep.subr.mxu0 0.0
  %207 = vmatpush1.msra.mxu0 %v26
  %208 = vmatprep.subr.mxu0 0.0
  %209 = vmatpush1.msra.mxu0 %v27
  %210 = vmatprep.subr.mxu0 0.0
  %211 = vmatpush1.msra.mxu0 %v28
  %212 = vmatprep.subr.mxu0 0.0
  %213 = vmatpush1.msra.mxu0 %v29
  %214 = vmatprep.subr.mxu0 0.0
  %215 = vmatpush1.msra.mxu0 %v30
  %216 = vmatprep.subr.mxu0 0.0
  %217 = vmatpush1.msra.mxu0 %v31
  %218 = vmatprep.subr.mxu0 0.0
  %219 = vmatpush1.msra.mxu0 %v32
  %220 = vmatprep.subr.mxu0 0.0
  %221 = vmatpush1.msra.mxu0 %v33
  %222 = vmatprep.subr.mxu0 0.0
  %223 = vmatpush1.msra.mxu0 %v34
  %224 = vmatprep.subr.mxu0 0.0
  %225 = vmatpush1.msra.mxu0 %v35
  %226 = vmatprep.subr.mxu0 0.0
  %227 = vmatpush1.msra.mxu0 0.0
  %228 = vmatprep.subr.mxu0 0.0
  %229 = vmatpush1.msra.mxu0 0.0
  %230 = vmatprep.subr.mxu0 0.0
  %231 = vmatpush1.msra.mxu0 0.0
  %232 = vmatprep.subr.mxu0 0.0
  %233 = vmatpush1.msra.mxu0 0.0
  %234 = vmatprep.subr.mxu0 0.0
  %235 = vmatpush1.msra.mxu0 0.0
  %236 = vmatprep.subr.mxu0 0.0
  %237 = vmatpush1.msra.mxu0 0.0
  %238 = vmatprep.subr.mxu0 0.0
  %239 = vmatpush1.msra.mxu0 0.0
  %240 = vmatprep.subr.mxu0 0.0
  %241 = vmatpush1.msra.mxu0 0.0
  %242 = vmatprep.subr.mxu0 0.0
  %243 = vmatpush1.msra.mxu0 0.0
  %244 = vmatprep.subr.mxu0 0.0
  %245 = vmatpush1.msra.mxu0 0.0
  %246 = vmatprep.subr.mxu0 0.0
  %247 = vmatpush1.msra.mxu0 0.0
  %248 = vmatprep.subr.mxu0 0.0
  %249 = vmatpush1.msra.mxu0 0.0
  %250 = vmatprep.subr.mxu0 0.0
  %251 = vmatpush1.msra.mxu0 0.0
  %252 = vmatprep.subr.mxu0 0.0
  %253 = vmatpush1.msra.mxu0 0.0
  %254 = vmatprep.subr.mxu0 0.0
  %255 = vmatpush1.msra.mxu0 0.0
  %256 = vmatprep.subr.mxu0 0.0
  %257 = vmatpush1.msra.mxu0 0.0
  %258 = vmatprep.mubr.f32.mxu0 0.0
  %259 = vmatmul.mubr.f32.gmra.mrb[0].mxu0 %v191
  %v260 = vpop.f32.mrb[0].mxu0
  %v261 = vadd.f32 %v193, %v260
  %v262 = vpop.f32.mrb[0].mxu0
  %263 = vdwg.mxu0
  %v264 = vmul.f32 %v188, 0.5
  %v265 = vmul.f32 %v261, 0.5
  %v266 = vadd.f32 %v264, %v265
  %s267 = scalar_lea.vmem %s3, 16
  %268 = vst [vmem:[%s267] sm:$0xff] %v266
  %v269 = vtanh.pop %v266
  %s270 = scalar_lea.vmem %s0, 24
  %v271 = vld [vmem:[%s270] sm:$0xff]
  %272 = vmatprep.subr.mxu0 0.0
  %273 = vmatpush1.msra.mxu0 %v20
  %274 = vmatprep.subr.mxu0 0.0
  %275 = vmatpush1.msra.mxu0 %v21
  %276 = vmatprep.subr.mxu0 0.0
  %277 = vmatpush1.msra.mxu0 %v22
  %278 = vmatprep.subr.mxu0 0.0
  %279 = vmatpush1.msra.mxu0 %v23
  %280 = vmatprep.subr.mxu0 0.0
  %281 = vmatpush1.msra.mxu0 %v24
  %282 = vmatprep.subr.mxu0 0.0
  %283 = vmatpush1.msra.mxu0 %v25
  %284 = vmatprep.subr.mxu0 0.0
  %285 = vmatpush1.msra.mxu0 %v26
  %286 = vmatprep.subr.mxu0 0.0
  %287 = vmatpush1.msra.mxu0 %v27
  %288 = vmatprep.subr.mxu0 0.0
  %289 = vmatpush1.msra.mxu0 %v28
  %290 = vmatprep.subr.mxu0 0.0
  %291 = vmatpush1.msra.mxu0 %v29
  %292 = vmatprep.subr.mxu0 0.0
  %293 = vmatpush1.msra.mxu0 %v30
  %294 = vmatprep.subr.mxu0 0.0
  %295 = vmatpush1.msra.mxu0 %v31
  %296 = vmatprep.subr.mxu0 0.0
  %297 = vmatpush1.msra.mxu0 %v32
  %298 = vmatprep.subr.mxu0 0.0
  %299 = vmatpush1.msra.mxu0 %v33
  %300 = vmatprep.subr.mxu0 0.0
  %301 = vmatpush1.msra.mxu0 %v34
  %302 = vmatprep.subr.mxu0 0.0
  %303 = vmatpush1.msra.mxu0 %v35
  %304 = vmatprep.subr.mxu0 0.0
  %305 = vmatpush1.msra.mxu0 0.0
  %306 = vmatprep.subr.mxu0 0.0
  %307 = vmatpush1.msra.mxu0 0.0
  %308 = vmatprep.subr.mxu0 0.0
  %309 = vmatpush1.msra.mxu0 0.0
  %310 = vmatprep.subr.mxu0 0.0
  %311 = vmatpush1.msra.mxu0 0.0
  %312 = vmatprep.subr.mxu0 0.0
  %313 = vmatpush1.msra.mxu0 0.0
  %314 = vmatprep.subr.mxu0 0.0
  %315 = vmatpush1.msra.mxu0 0.0
  %316 = vmatprep.subr.mxu0 0.0
  %317 = vmatpush1.msra.mxu0 0.0
  %318 = vmatprep.subr.mxu0 0.0
  %319 = vmatpush1.msra.mxu0 0.0
  %320 = vmatprep.subr.mxu0 0.0
  %321 = vmatpush1.msra.mxu0 0.0
  %322 = vmatprep.subr.mxu0 0.0
  %323 = vmatpush1.msra.mxu0 0.0
  %324 = vmatprep.subr.mxu0 0.0
  %325 = vmatpush1.msra.mxu0 0.0
  %326 = vmatprep.subr.mxu0 0.0
  %327 = vmatpush1.msra.mxu0 0.0
  %328 = vmatprep.subr.mxu0 0.0
  %329 = vmatpush1.msra.mxu0 0.0
  %330 = vmatprep.subr.mxu0 0.0
  %331 = vmatpush1.msra.mxu0 0.0
  %332 = vmatprep.subr.mxu0 0.0
  %333 = vmatpush1.msra.mxu0 0.0
  %334 = vmatprep.subr.mxu0 0.0
  %335 = vmatpush1.msra.mxu0 0.0
  %336 = vmatprep.mubr.f32.mxu0 0.0
  %337 = vmatmul.mubr.f32.gmra.mrb[0].mxu0 %v269
  %v338 = vpop.f32.mrb[0].mxu0
  %v339 = vadd.f32 %v271, %v338
  %v340 = vpop.f32.mrb[0].mxu0
  %341 = vdwg.mxu0
  %v342 = vmul.f32 %v266, 0.5
  %v343 = vmul.f32 %v339, 0.5
  %v344 = vadd.f32 %v342, %v343
  %s345 = scalar_lea.vmem %s3, 24
  %346 = vst [vmem:[%s345] sm:$0xff] %v344
  %v347 = vtanh.pop %v344
  %s348 = scalar_lea.vmem %s0, 32
  %v349 = vld [vmem:[%s348] sm:$0xff]
  %350 = vmatprep.subr.mxu0 0.0
  %351 = vmatpush1.msra.mxu0 %v20
  %352 = vmatprep.subr.mxu0 0.0
  %353 = vmatpush1.msra.mxu0 %v21
  %354 = vmatprep.subr.mxu0 0.0
  %355 = vmatpush1.msra.mxu0 %v22
  %356 = vmatprep.subr.mxu0 0.0
  %357 = vmatpush1.msra.mxu0 %v23
  %358 = vmatprep.subr.mxu0 0.0
  %359 = vmatpush1.msra.mxu0 %v24
  %360 = vmatprep.subr.mxu0 0.0
  %361 = vmatpush1.msra.mxu0 %v25
  %362 = vmatprep.subr.mxu0 0.0
  %363 = vmatpush1.msra.mxu0 %v26
  %364 = vmatprep.subr.mxu0 0.0
  %365 = vmatpush1.msra.mxu0 %v27
  %366 = vmatprep.subr.mxu0 0.0
  %367 = vmatpush1.msra.mxu0 %v28
  %368 = vmatprep.subr.mxu0 0.0
  %369 = vmatpush1.msra.mxu0 %v29
  %370 = vmatprep.subr.mxu0 0.0
  %371 = vmatpush1.msra.mxu0 %v30
  %372 = vmatprep.subr.mxu0 0.0
  %373 = vmatpush1.msra.mxu0 %v31
  %374 = vmatprep.subr.mxu0 0.0
  %375 = vmatpush1.msra.mxu0 %v32
  %376 = vmatprep.subr.mxu0 0.0
  %377 = vmatpush1.msra.mxu0 %v33
  %378 = vmatprep.subr.mxu0 0.0
  %379 = vmatpush1.msra.mxu0 %v34
  %380 = vmatprep.subr.mxu0 0.0
  %381 = vmatpush1.msra.mxu0 %v35
  %382 = vmatprep.subr.mxu0 0.0
  %383 = vmatpush1.msra.mxu0 0.0
  %384 = vmatprep.subr.mxu0 0.0
  %385 = vmatpush1.msra.mxu0 0.0
  %386 = vmatprep.subr.mxu0 0.0
  %387 = vmatpush1.msra.mxu0 0.0
  %388 = vmatprep.subr.mxu0 0.0
  %389 = vmatpush1.msra.mxu0 0.0
  %390 = vmatprep.subr.mxu0 0.0
  %391 = vmatpush1.msra.mxu0 0.0
  %392 = vmatprep.subr.mxu0 0.0
  %393 = vmatpush1.msra.mxu0 0.0
  %394 = vmatprep.subr.mxu0 0.0
  %395 = vmatpush1.msra.mxu0 0.0
  %396 = vmatprep.subr.mxu0 0.0
  %397 = vmatpush1.msra.mxu0 0.0
  %398 = vmatprep.subr.mxu0 0.0
  %399 = vmatpush1.msra.mxu0 0.0
  %400 = vmatprep.subr.mxu0 0.0
  %401 = vmatpush1.msra.mxu0 0.0
  %402 = vmatprep.subr.mxu0 0.0
  %403 = vmatpush1.msra.mxu0 0.0
  %404 = vmatprep.subr.mxu0 0.0
  %405 = vmatpush1.msra.mxu0 0.0
  %406 = vmatprep.subr.mxu0 0.0
  %407 = vmatpush1.msra.mxu0 0.0
  %408 = vmatprep.subr.mxu0 0.0
  %409 = vmatpush1.msra.mxu0 0.0
  %410 = vmatprep.subr.mxu0 0.0
  %411 = vmatpush1.msra.mxu0 0.0
  %412 = vmatprep.subr.mxu0 0.0
  %413 = vmatpush1.msra.mxu0 0.0
  %414 = vmatprep.mubr.f32.mxu0 0.0
  %415 = vmatmul.mubr.f32.gmra.mrb[0].mxu0 %v347
  %v416 = vpop.f32.mrb[0].mxu0
  %v417 = vadd.f32 %v349, %v416
  %v418 = vpop.f32.mrb[0].mxu0
  %419 = vdwg.mxu0
  %v420 = vmul.f32 %v344, 0.5
  %v421 = vmul.f32 %v417, 0.5
  %v422 = vadd.f32 %v420, %v421
  %s423 = scalar_lea.vmem %s3, 32
  %424 = vst [vmem:[%s423] sm:$0xff] %v422
  %v425 = vtanh.pop %v422
  %s426 = scalar_lea.vmem %s0, 40
  %v427 = vld [vmem:[%s426] sm:$0xff]
  %428 = vmatprep.subr.mxu0 0.0
  %429 = vmatpush1.msra.mxu0 %v20
  %430 = vmatprep.subr.mxu0 0.0
  %431 = vmatpush1.msra.mxu0 %v21
  %432 = vmatprep.subr.mxu0 0.0
  %433 = vmatpush1.msra.mxu0 %v22
  %434 = vmatprep.subr.mxu0 0.0
  %435 = vmatpush1.msra.mxu0 %v23
  %436 = vmatprep.subr.mxu0 0.0
  %437 = vmatpush1.msra.mxu0 %v24
  %438 = vmatprep.subr.mxu0 0.0
  %439 = vmatpush1.msra.mxu0 %v25
  %440 = vmatprep.subr.mxu0 0.0
  %441 = vmatpush1.msra.mxu0 %v26
  %442 = vmatprep.subr.mxu0 0.0
  %443 = vmatpush1.msra.mxu0 %v27
  %444 = vmatprep.subr.mxu0 0.0
  %445 = vmatpush1.msra.mxu0 %v28
  %446 = vmatprep.subr.mxu0 0.0
  %447 = vmatpush1.msra.mxu0 %v29
  %448 = vmatprep.subr.mxu0 0.0
  %449 = vmatpush1.msra.mxu0 %v30
  %450 = vmatprep.subr.mxu0 0.0
  %451 = vmatpush1.msra.mxu0 %v31
  %452 = vmatprep.subr.mxu0 0.0
  %453 = vmatpush1.msra.mxu0 %v32
  %454 = vmatprep.subr.mxu0 0.0
  %455 = vmatpush1.msra.mxu0 %v33
  %456 = vmatprep.subr.mxu0 0.0
  %457 = vmatpush1.msra.mxu0 %v34
  %458 = vmatprep.subr.mxu0 0.0
  %459 = vmatpush1.msra.mxu0 %v35
  %460 = vmatprep.subr.mxu0 0.0
  %461 = vmatpush1.msra.mxu0 0.0
  %462 = vmatprep.subr.mxu0 0.0
  %463 = vmatpush1.msra.mxu0 0.0
  %464 = vmatprep.subr.mxu0 0.0
  %465 = vmatpush1.msra.mxu0 0.0
  %466 = vmatprep.subr.mxu0 0.0
  %467 = vmatpush1.msra.mxu0 0.0
  %468 = vmatprep.subr.mxu0 0.0
  %469 = vmatpush1.msra.mxu0 0.0
  %470 = vmatprep.subr.mxu0 0.0
  %471 = vmatpush1.msra.mxu0 0.0
  %472 = vmatprep.subr.mxu0 0.0
  %473 = vmatpush1.msra.mxu0 0.0
  %474 = vmatprep.subr.mxu0 0.0
  %475 = vmatpush1.msra.mxu0 0.0
  %476 = vmatprep.subr.mxu0 0.0
  %477 = vmatpush1.msra.mxu0 0.0
  %478 = vmatprep.subr.mxu0 0.0
  %479 = vmatpush1.msra.mxu0 0.0
  %480 = vmatprep.subr.mxu0 0.0
  %481 = vmatpush1.msra.mxu0 0.0
  %482 = vmatprep.subr.mxu0 0.0
  %483 = vmatpush1.msra.mxu0 0.0
  %484 = vmatprep.subr.mxu0 0.0
  %485 = vmatpush1.msra.mxu0 0.0
  %486 = vmatprep.subr.mxu0 0.0
  %487 = vmatpush1.msra.mxu0 0.0
  %488 = vmatprep.subr.mxu0 0.0
  %489 = vmatpush1.msra.mxu0 0.0
  %490 = vmatprep.subr.mxu0 0.0
  %491 = vmatpush1.msra.mxu0 0.0
  %492 = vmatprep.mubr.f32.mxu0 0.0
  %493 = vmatmul.mubr.f32.gmra.mrb[0].mxu0 %v425
  %v494 = vpop.f32.mrb[0].mxu0
  %v495 = vadd.f32 %v427, %v494
  %v496 = vpop.f32.mrb[0].mxu0
  %497 = vdwg.mxu0
  %v498 = vmul.f32 %v422, 0.5
  %v499 = vmul.f32 %v495, 0.5
  %v500 = vadd.f32 %v498, %v499
  %s501 = scalar_lea.vmem %s3, 40
  %502 = vst [vmem:[%s501] sm:$0xff] %v500
  %v503 = vtanh.pop %v500
  %s504 = scalar_lea.vmem %s0, 48
  %v505 = vld [vmem:[%s504] sm:$0xff]
  %506 = vmatprep.subr.mxu0 0.0
  %507 = vmatpush1.msra.mxu0 %v20
  %508 = vmatprep.subr.mxu0 0.0
  %509 = vmatpush1.msra.mxu0 %v21
  %510 = vmatprep.subr.mxu0 0.0
  %511 = vmatpush1.msra.mxu0 %v22
  %512 = vmatprep.subr.mxu0 0.0
  %513 = vmatpush1.msra.mxu0 %v23
  %514 = vmatprep.subr.mxu0 0.0
  %515 = vmatpush1.msra.mxu0 %v24
  %516 = vmatprep.subr.mxu0 0.0
  %517 = vmatpush1.msra.mxu0 %v25
  %518 = vmatprep.subr.mxu0 0.0
  %519 = vmatpush1.msra.mxu0 %v26
  %520 = vmatprep.subr.mxu0 0.0
  %521 = vmatpush1.msra.mxu0 %v27
  %522 = vmatprep.subr.mxu0 0.0
  %523 = vmatpush1.msra.mxu0 %v28
  %524 = vmatprep.subr.mxu0 0.0
  %525 = vmatpush1.msra.mxu0 %v29
  %526 = vmatprep.subr.mxu0 0.0
  %527 = vmatpush1.msra.mxu0 %v30
  %528 = vmatprep.subr.mxu0 0.0
  %529 = vmatpush1.msra.mxu0 %v31
  %530 = vmatprep.subr.mxu0 0.0
  %531 = vmatpush1.msra.mxu0 %v32
  %532 = vmatprep.subr.mxu0 0.0
  %533 = vmatpush1.msra.mxu0 %v33
  %534 = vmatprep.subr.mxu0 0.0
  %535 = vmatpush1.msra.mxu0 %v34
  %536 = vmatprep.subr.mxu0 0.0
  %537 = vmatpush1.msra.mxu0 %v35
  %538 = vmatprep.subr.mxu0 0.0
  %539 = vmatpush1.msra.mxu0 0.0
  %540 = vmatprep.subr.mxu0 0.0
  %541 = vmatpush1.msra.mxu0 0.0
  %542 = vmatprep.subr.mxu0 0.0
  %543 = vmatpush1.msra.mxu0 0.0
  %544 = vmatprep.subr.mxu0 0.0
  %545 = vmatpush1.msra.mxu0 0.0
  %546 = vmatprep.subr.mxu0 0.0
  %547 = vmatpush1.msra.mxu0 0.0
  %548 = vmatprep.subr.mxu0 0.0
  %549 = vmatpush1.msra.mxu0 0.0
  %550 = vmatprep.subr.mxu0 0.0
  %551 = vmatpush1.msra.mxu0 0.0
  %552 = vmatprep.subr.mxu0 0.0
  %553 = vmatpush1.msra.mxu0 0.0
  %554 = vmatprep.subr.mxu0 0.0
  %555 = vmatpush1.msra.mxu0 0.0
  %556 = vmatprep.subr.mxu0 0.0
  %557 = vmatpush1.msra.mxu0 0.0
  %558 = vmatprep.subr.mxu0 0.0
  %559 = vmatpush1.msra.mxu0 0.0
  %560 = vmatprep.subr.mxu0 0.0
  %561 = vmatpush1.msra.mxu0 0.0
  %562 = vmatprep.subr.mxu0 0.0
  %563 = vmatpush1.msra.mxu0 0.0
  %564 = vmatprep.subr.mxu0 0.0
  %565 = vmatpush1.msra.mxu0 0.0
  %566 = vmatprep.subr.mxu0 0.0
  %567 = vmatpush1.msra.mxu0 0.0
  %568 = vmatprep.subr.mxu0 0.0
  %569 = vmatpush1.msra.mxu0 0.0
  %570 = vmatprep.mubr.f32.mxu0 0.0
  %571 = vmatmul.mubr.f32.gmra.mrb[0].mxu0 %v503
  %v572 = vpop.f32.mrb[0].mxu0
  %v573 = vadd.f32 %v505, %v572
  %v574 = vpop.f32.mrb[0].mxu0
  %575 = vdwg.mxu0
  %v576 = vmul.f32 %v500, 0.5
  %v577 = vmul.f32 %v573, 0.5
  %v578 = vadd.f32 %v576, %v577
  %s579 = scalar_lea.vmem %s3, 48
  %580 = vst [vmem:[%s579] sm:$0xff] %v578
  %v581 = vtanh.pop %v578
  %s582 = scalar_lea.vmem %s0, 56
  %v583 = vld [vmem:[%s582] sm:$0xff]
  %584 = vmatprep.subr.mxu0 0.0
  %585 = vmatpush1.msra.mxu0 %v20
  %586 = vmatprep.subr.mxu0 0.0
  %587 = vmatpush1.msra.mxu0 %v21
  %588 = vmatprep.subr.mxu0 0.0
  %589 = vmatpush1.msra.mxu0 %v22
  %590 = vmatprep.subr.mxu0 0.0
  %591 = vmatpush1.msra.mxu0 %v23
  %592 = vmatprep.subr.mxu0 0.0
  %593 = vmatpush1.msra.mxu0 %v24
  %594 = vmatprep.subr.mxu0 0.0
  %595 = vmatpush1.msra.mxu0 %v25
  %596 = vmatprep.subr.mxu0 0.0
  %597 = vmatpush1.msra.mxu0 %v26
  %598 = vmatprep.subr.mxu0 0.0
  %599 = vmatpush1.msra.mxu0 %v27
  %600 = vmatprep.subr.mxu0 0.0
  %601 = vmatpush1.msra.mxu0 %v28
  %602 = vmatprep.subr.mxu0 0.0
  %603 = vmatpush1.msra.mxu0 %v29
  %604 = vmatprep.subr.mxu0 0.0
  %605 = vmatpush1.msra.mxu0 %v30
  %606 = vmatprep.subr.mxu0 0.0
  %607 = vmatpush1.msra.mxu0 %v31
  %608 = vmatprep.subr.mxu0 0.0
  %609 = vmatpush1.msra.mxu0 %v32
  %610 = vmatprep.subr.mxu0 0.0
  %611 = vmatpush1.msra.mxu0 %v33
  %612 = vmatprep.subr.mxu0 0.0
  %613 = vmatpush1.msra.mxu0 %v34
  %614 = vmatprep.subr.mxu0 0.0
  %615 = vmatpush1.msra.mxu0 %v35
  %616 = vmatprep.subr.mxu0 0.0
  %617 = vmatpush1.msra.mxu0 0.0
  %618 = vmatprep.subr.mxu0 0.0
  %619 = vmatpush1.msra.mxu0 0.0
  %620 = vmatprep.subr.mxu0 0.0
  %621 = vmatpush1.msra.mxu0 0.0
  %622 = vmatprep.subr.mxu0 0.0
  %623 = vmatpush1.msra.mxu0 0.0
  %624 = vmatprep.subr.mxu0 0.0
  %625 = vmatpush1.msra.mxu0 0.0
  %626 = vmatprep.subr.mxu0 0.0
  %627 = vmatpush1.msra.mxu0 0.0
  %628 = vmatprep.subr.mxu0 0.0
  %629 = vmatpush1.msra.mxu0 0.0
  %630 = vmatprep.subr.mxu0 0.0
  %631 = vmatpush1.msra.mxu0 0.0
  %632 = vmatprep.subr.mxu0 0.0
  %633 = vmatpush1.msra.mxu0 0.0
  %634 = vmatprep.subr.mxu0 0.0
  %635 = vmatpush1.msra.mxu0 0.0
  %636 = vmatprep.subr.mxu0 0.0
  %637 = vmatpush1.msra.mxu0 0.0
  %638 = vmatprep.subr.mxu0 0.0
  %639 = vmatpush1.msra.mxu0 0.0
  %640 = vmatprep.subr.mxu0 0.0
  %641 = vmatpush1.msra.mxu0 0.0
  %642 = vmatprep.subr.mxu0 0.0
  %643 = vmatpush1.msra.mxu0 0.0
  %644 = vmatprep.subr.mxu0 0.0
  %645 = vmatpush1.msra.mxu0 0.0
  %646 = vmatprep.subr.mxu0 0.0
  %647 = vmatpush1.msra.mxu0 0.0
  %648 = vmatprep.mubr.f32.mxu0 0.0
  %649 = vmatmul.mubr.f32.gmra.mrb[0].mxu0 %v581
  %v650 = vpop.f32.mrb[0].mxu0
  %v651 = vadd.f32 %v583, %v650
  %v652 = vpop.f32.mrb[0].mxu0
  %653 = vdwg.mxu0
  %v654 = vmul.f32 %v578, 0.5
  %v655 = vmul.f32 %v651, 0.5
  %v656 = vadd.f32 %v654, %v655
  %s657 = scalar_lea.vmem %s3, 56
  %658 = vst [vmem:[%s657] sm:$0xff] %v656
  %659 = vst [vmem:[#allocation2] sm:$0xff] %v656
  // Predicated region
  $region18: #{leaky_current_rnn_forward.1} parent=0 // pred_check
    _
  $region19: #{leaky_current_rnn_forward.1} parent=0 // pred_check_branch
    %661 = sbr.rel (0) target = $region21
  $region20: #{leaky_current_rnn_forward.1} parent=0 // pred_region
    _
  $region21: #{leaky_current_rnn_forward.1} parent=0 // pred_fallthru
    _
  // Predicated region
  $region22: #{leaky_current_rnn_forward.1} parent=0 // pred_check
    _
  $region23: #{leaky_current_rnn_forward.1} parent=0 // pred_check_branch
    %663 = sbr.rel (0) target = $region25
  $region24: #{leaky_current_rnn_forward.1} parent=0 // pred_region
    _
  $region25: #{leaky_current_rnn_forward.1} parent=0 // pred_fallthru
    _

</llo_original>
